<compile_context>
chip_gen: v7x
topology: tpu7x:2x2x1
jax: 0.10.0
libtpu: 0.0.40
codegen_flags: <defaults>
</compile_context>

<pallas_src>
import jax
import jax.numpy as jnp
from jax.experimental import pallas as pl
from jax.experimental.pallas import tpu as pltpu


# ---------------- fused Pallas kernel ----------------

def fused_gradcam_kernel(taps_ref, w_ref, b_ref, wet_ref, be_ref, wct_ref,
                         bc_ref, sel_ref, logits_ref):
    # taps_ref : [1, C*K*K, H*W]   shifted-slice (im2col) rows, lane-dense
    # w_ref    : [F, C*K*K]        conv weight, tap-major / channel-minor
    # b_ref    : [F, 1]            conv bias (column)
    # wet_ref  : [E, F]            embedding weight, transposed
    # be_ref   : [E, 1]
    # wct_ref  : [NC, E]           classifier weight, transposed
    # bc_ref   : [NC, 1]
    # sel_ref  : [1, F, H*W]       hooked conv activations (lane-dense, NCHW-native)
    # logits_ref: [1, NC, 1]
    conv = jnp.dot(w_ref[...], taps_ref[0],
                   preferred_element_type=jnp.float32)          # [F, H*W]
    conv = jnp.maximum(conv + b_ref[...], 0.0)                  # conv + ReLU
    sel_ref[0] = conv.astype(sel_ref.dtype)

    pooled = jnp.mean(conv, axis=1, keepdims=True)              # [F, 1] GAP
    emb = jnp.dot(wet_ref[...], pooled,
                  preferred_element_type=jnp.float32) + be_ref[...]
    emb = jnp.maximum(emb, 0.0)                                 # [E, 1]
    logits = jnp.dot(wct_ref[...], emb,
                     preferred_element_type=jnp.float32) + bc_ref[...]
    logits_ref[0] = logits.astype(logits_ref.dtype)             # [NC, 1]


# ---------------- JAX glue ----------------

def gradcam_forward(x, params):
    B, C, H, W = x.shape
    conv_w, conv_b = params["conv_w"], params["conv_b"]         # [F,C,K,K], [F]
    F_, _, K, _ = conv_w.shape
    pad = K // 2
    HW = H * W
    KKC = K * K * C

    # Lane-dense shifted-slice layout: taps[b, t*C+c, i*W+j] = xpad[b, c, i+di, j+dj]
    # with t = di*K + dj.  (For large feature maps this belongs in-kernel.)
    xp = jnp.pad(x, ((0, 0), (0, 0), (pad, pad), (pad, pad)))
    slabs = [xp[:, :, di:di + H, dj:dj + W]
             for di in range(K) for dj in range(K)]              # each [B,C,H,W]
    taps = jnp.stack(slabs, axis=1).reshape(B, KKC, HW)          # [B, K*K*C, H*W]

    # Weight matched to the tap ordering: w2d[f, t*C+c] = conv_w[f, c, di, dj]
    w2d = conv_w.transpose(0, 2, 3, 1).reshape(F_, KKC)          # [F, K*K*C]
    b_col = conv_b.reshape(F_, 1)

    we_t = params["emb_w"].T                                     # [E, F]
    be_col = params["emb_b"].reshape(-1, 1)                      # [E, 1]
    wc_t = params["cls_w"].T                                     # [NC, E]
    bc_col = params["cls_b"].reshape(-1, 1)                      # [NC, 1]
    E = we_t.shape[0]
    NC = wc_t.shape[0]

    sel_flat, logits_col = pl.pallas_call(
        fused_gradcam_kernel,
        out_shape=(
            jax.ShapeDtypeStruct((B, F_, HW), jnp.float32),
            jax.ShapeDtypeStruct((B, NC, 1), jnp.float32),
        ),
        grid=(B,),
        in_specs=[
            pl.BlockSpec((1, KKC, HW), lambda b: (b, 0, 0)),
            pl.BlockSpec((F_, KKC), lambda b: (0, 0)),
            pl.BlockSpec((F_, 1), lambda b: (0, 0)),
            pl.BlockSpec((E, F_), lambda b: (0, 0)),
            pl.BlockSpec((E, 1), lambda b: (0, 0)),
            pl.BlockSpec((NC, E), lambda b: (0, 0)),
            pl.BlockSpec((NC, 1), lambda b: (0, 0)),
        ],
        out_specs=(
            pl.BlockSpec((1, F_, HW), lambda b: (b, 0, 0)),
            pl.BlockSpec((1, NC, 1), lambda b: (b, 0, 0)),
        ),
        compiler_params=pltpu.CompilerParams(
            dimension_semantics=("parallel",)),
    )(taps, w2d, b_col, we_t, be_col, wc_t, bc_col)

    logits = logits_col.reshape(B, NC)
    # [B, F, H*W] -> [B, F, H, W] is a free (layout-preserving) reshape: NCHW.
    selected_out = sel_flat.reshape(B, F_, H, W)
    return logits, selected_out


# ---------------- pure-JAX reference (correctness guard) ----------------

def gradcam_reference(x, params):
    conv = jax.lax.conv_general_dilated(
        x, params["conv_w"], window_strides=(1, 1), padding="SAME",
        dimension_numbers=("NCHW", "OIHW", "NCHW"))
    sel = jnp.maximum(conv + params["conv_b"][None, :, None, None], 0.0)
    pooled = sel.mean(axis=(2, 3))
    emb = jnp.maximum(pooled @ params["emb_w"] + params["emb_b"], 0.0)
    logits = emb @ params["cls_w"] + params["cls_b"]
    return logits, sel


if __name__ == "__main__":
    key = jax.random.PRNGKey(0)
    kx, k1, k2, k3, k4, k5, k6 = jax.random.split(key, 7)

    B, C, H, W = 2, 4, 16, 16
    F_, K, E, NC = 8, 3, 32, 5

    x = jax.random.normal(kx, (B, C, H, W), jnp.float32)
    params = {
        "conv_w": jax.random.normal(k1, (F_, C, K, K), jnp.float32) * 0.1,
        "conv_b": jax.random.normal(k2, (F_,), jnp.float32) * 0.1,
        "emb_w":  jax.random.normal(k3, (F_, E), jnp.float32) * 0.1,
        "emb_b":  jax.random.normal(k4, (E,), jnp.float32) * 0.1,
        "cls_w":  jax.random.normal(k5, (E, NC), jnp.float32) * 0.1,
        "cls_b":  jax.random.normal(k6, (NC,), jnp.float32) * 0.1,
    }

    logits, selected = jax.jit(gradcam_forward)(x, params)
    jax.block_until_ready((logits, selected))
    assert logits.shape == (B, NC)
    assert selected.shape == (B, F_, H, W)

    ref_logits, ref_selected = gradcam_reference(x, params)
    assert jnp.allclose(selected, ref_selected, atol=1e-4, rtol=1e-4)
    assert jnp.allclose(logits, ref_logits, atol=1e-4, rtol=1e-4)

    print("KERNEL_OK")
</pallas_src>

<mosaic_0001>
module attributes {stable_mosaic.version = 11 : i64} {
  func.func @fused_gradcam_kernel(%arg0: i32, %arg1: memref<1x36x256xf32, #tpu.memory_space<vmem>>, %arg2: memref<8x36xf32, #tpu.memory_space<vmem>>, %arg3: memref<8x1xf32, #tpu.memory_space<vmem>>, %arg4: memref<32x8xf32, #tpu.memory_space<vmem>>, %arg5: memref<32x1xf32, #tpu.memory_space<vmem>>, %arg6: memref<5x32xf32, #tpu.memory_space<vmem>>, %arg7: memref<5x1xf32, #tpu.memory_space<vmem>>, %arg8: memref<1x8x256xf32, #tpu.memory_space<vmem>>, %arg9: memref<1x5x1xf32, #tpu.memory_space<vmem>>) attributes {dimension_semantics = [#tpu.dimension_semantics<parallel>], iteration_bounds = array<i64: 2>, scalar_prefetch = 0 : i64, scratch_operands = 0 : i64, tpu.core_type = #tpu.core_type<tc>, window_params = [{transform_indices = @transform_0, window_bounds = array<i64: 1, 36, 256>}, {pipeline_mode = #tpu.pipeline_mode<synchronous>, transform_indices = @transform_1, window_bounds = array<i64: 8, 36>}, {pipeline_mode = #tpu.pipeline_mode<synchronous>, transform_indices = @transform_2, window_bounds = array<i64: 8, 1>}, {pipeline_mode = #tpu.pipeline_mode<synchronous>, transform_indices = @transform_3, window_bounds = array<i64: 32, 8>}, {pipeline_mode = #tpu.pipeline_mode<synchronous>, transform_indices = @transform_4, window_bounds = array<i64: 32, 1>}, {pipeline_mode = #tpu.pipeline_mode<synchronous>, transform_indices = @transform_5, window_bounds = array<i64: 5, 32>}, {pipeline_mode = #tpu.pipeline_mode<synchronous>, transform_indices = @transform_6, window_bounds = array<i64: 5, 1>}, {transform_indices = @transform_7, window_bounds = array<i64: 1, 8, 256>}, {transform_indices = @transform_8, window_bounds = array<i64: 1, 5, 1>}]} {
    %c0 = arith.constant 0 : index
    %c0_0 = arith.constant 0 : index
    %0 = vector.load %arg2[%c0, %c0_0] : memref<8x36xf32, #tpu.memory_space<vmem>>, vector<8x36xf32>
    %c0_1 = arith.constant 0 : index
    %c0_2 = arith.constant 0 : index
    %c0_3 = arith.constant 0 : index
    %1 = vector.load %arg1[%c0_1, %c0_2, %c0_3] : memref<1x36x256xf32, #tpu.memory_space<vmem>>, vector<1x36x256xf32>
    %2 = vector.shape_cast %1 : vector<1x36x256xf32> to vector<36x256xf32>
    %cst = arith.constant dense<0.000000e+00> : vector<8x256xf32>
    %3 = tpu.matmul %0, %2, %cst {dimension_numbers = #tpu.dot_dimension_numbers<[1], [0], [0], [1], [0, 0, 1, 1], [], []>} : vector<8x36xf32>, vector<36x256xf32>, vector<8x256xf32> -> vector<8x256xf32>
    %c0_4 = arith.constant 0 : index
    %c0_5 = arith.constant 0 : index
    %4 = vector.load %arg3[%c0_4, %c0_5] : memref<8x1xf32, #tpu.memory_space<vmem>>, vector<8x1xf32>
    %5 = vector.broadcast %4 : vector<8x1xf32> to vector<8x256xf32>
    %6 = arith.addf %3, %5 : vector<8x256xf32>
    %cst_6 = arith.constant 0.000000e+00 : f32
    %7 = vector.broadcast %cst_6 : f32 to vector<8x256xf32>
    %8 = arith.maximumf %6, %7 : vector<8x256xf32>
    %c0_7 = arith.constant 0 : index
    %c0_8 = arith.constant 0 : index
    %c0_9 = arith.constant 0 : index
    %9 = vector.load %arg8[%c0_7, %c0_8, %c0_9] : memref<1x8x256xf32, #tpu.memory_space<vmem>>, vector<1x8x256xf32>
    %10 = vector.shape_cast %9 : vector<1x8x256xf32> to vector<8x256xf32>
    %11 = vector.shape_cast %8 : vector<8x256xf32> to vector<1x8x256xf32>
    tpu.vector_store %arg8[%c0_7, %c0_8, %c0_9], %11 {strides = array<i32>} : memref<1x8x256xf32, #tpu.memory_space<vmem>>, vector<1x8x256xf32>,
    %cst_10 = arith.constant dense<0.000000e+00> : vector<8xf32>
    %12 = vector.multi_reduction <add>, %8, %cst_10 [1] : vector<8x256xf32> to vector<8xf32>
    %13 = vector.shape_cast %12 : vector<8xf32> to vector<8x1xf32>
    %cst_11 = arith.constant 2.560000e+02 : f32
    %14 = vector.broadcast %cst_11 : f32 to vector<8x1xf32>
    %15 = arith.divf %13, %14 : vector<8x1xf32>
    %c0_12 = arith.constant 0 : index
    %c0_13 = arith.constant 0 : index
    %16 = vector.load %arg4[%c0_12, %c0_13] : memref<32x8xf32, #tpu.memory_space<vmem>>, vector<32x8xf32>
    %cst_14 = arith.constant dense<0.000000e+00> : vector<32x1xf32>
    %17 = tpu.matmul %16, %15, %cst_14 {dimension_numbers = #tpu.dot_dimension_numbers<[1], [0], [0], [1], [0, 0, 1, 1], [], []>} : vector<32x8xf32>, vector<8x1xf32>, vector<32x1xf32> -> vector<32x1xf32>
    %c0_15 = arith.constant 0 : index
    %c0_16 = arith.constant 0 : index
    %18 = vector.load %arg5[%c0_15, %c0_16] : memref<32x1xf32, #tpu.memory_space<vmem>>, vector<32x1xf32>
    %19 = arith.addf %17, %18 : vector<32x1xf32>
    %cst_17 = arith.constant 0.000000e+00 : f32
    %20 = vector.broadcast %cst_17 : f32 to vector<32x1xf32>
    %21 = arith.maximumf %19, %20 : vector<32x1xf32>
    %c0_18 = arith.constant 0 : index
    %c0_19 = arith.constant 0 : index
    %22 = vector.load %arg6[%c0_18, %c0_19] : memref<5x32xf32, #tpu.memory_space<vmem>>, vector<5x32xf32>
    %cst_20 = arith.constant dense<0.000000e+00> : vector<5x1xf32>
    %23 = tpu.matmul %22, %21, %cst_20 {dimension_numbers = #tpu.dot_dimension_numbers<[1], [0], [0], [1], [0, 0, 1, 1], [], []>} : vector<5x32xf32>, vector<32x1xf32>, vector<5x1xf32> -> vector<5x1xf32>
    %c0_21 = arith.constant 0 : index
    %c0_22 = arith.constant 0 : index
    %24 = vector.load %arg7[%c0_21, %c0_22] : memref<5x1xf32, #tpu.memory_space<vmem>>, vector<5x1xf32>
    %25 = arith.addf %23, %24 : vector<5x1xf32>
    %c0_23 = arith.constant 0 : index
    %c0_24 = arith.constant 0 : index
    %c0_25 = arith.constant 0 : index
    %26 = vector.load %arg9[%c0_23, %c0_24, %c0_25] : memref<1x5x1xf32, #tpu.memory_space<vmem>>, vector<1x5x1xf32>
    %27 = vector.shape_cast %26 : vector<1x5x1xf32> to vector<5x1xf32>
    %28 = vector.shape_cast %25 : vector<5x1xf32> to vector<1x5x1xf32>
    tpu.vector_store %arg9[%c0_23, %c0_24, %c0_25], %28 {strides = array<i32>} : memref<1x5x1xf32, #tpu.memory_space<vmem>>, vector<1x5x1xf32>,
    return
  }
  func.func @transform_0(%arg0: i32) -> (i32, i32, i32) {
    %c0_i32 = arith.constant 0 : i32
    %c0_i32_0 = arith.constant 0 : i32
    %c0_i32_1 = arith.constant 0 : i32
    return %arg0, %c0_i32, %c0_i32_0 : i32, i32, i32
  }
  func.func @transform_1(%arg0: i32) -> (i32, i32) {
    %c0_i32 = arith.constant 0 : i32
    %c0_i32_0 = arith.constant 0 : i32
    %c0_i32_1 = arith.constant 0 : i32
    return %c0_i32, %c0_i32_0 : i32, i32
  }
  func.func @transform_2(%arg0: i32) -> (i32, i32) {
    %c0_i32 = arith.constant 0 : i32
    %c0_i32_0 = arith.constant 0 : i32
    %c0_i32_1 = arith.constant 0 : i32
    return %c0_i32, %c0_i32_0 : i32, i32
  }
  func.func @transform_3(%arg0: i32) -> (i32, i32) {
    %c0_i32 = arith.constant 0 : i32
    %c0_i32_0 = arith.constant 0 : i32
    %c0_i32_1 = arith.constant 0 : i32
    return %c0_i32, %c0_i32_0 : i32, i32
  }
  func.func @transform_4(%arg0: i32) -> (i32, i32) {
    %c0_i32 = arith.constant 0 : i32
    %c0_i32_0 = arith.constant 0 : i32
    %c0_i32_1 = arith.constant 0 : i32
    return %c0_i32, %c0_i32_0 : i32, i32
  }
  func.func @transform_5(%arg0: i32) -> (i32, i32) {
    %c0_i32 = arith.constant 0 : i32
    %c0_i32_0 = arith.constant 0 : i32
    %c0_i32_1 = arith.constant 0 : i32
    return %c0_i32, %c0_i32_0 : i32, i32
  }
  func.func @transform_6(%arg0: i32) -> (i32, i32) {
    %c0_i32 = arith.constant 0 : i32
    %c0_i32_0 = arith.constant 0 : i32
    %c0_i32_1 = arith.constant 0 : i32
    return %c0_i32, %c0_i32_0 : i32, i32
  }
  func.func @transform_7(%arg0: i32) -> (i32, i32, i32) {
    %c0_i32 = arith.constant 0 : i32
    %c0_i32_0 = arith.constant 0 : i32
    %c0_i32_1 = arith.constant 0 : i32
    return %arg0, %c0_i32, %c0_i32_0 : i32, i32, i32
  }
  func.func @transform_8(%arg0: i32) -> (i32, i32, i32) {
    %c0_i32 = arith.constant 0 : i32
    %c0_i32_0 = arith.constant 0 : i32
    %c0_i32_1 = arith.constant 0 : i32
    return %arg0, %c0_i32, %c0_i32_0 : i32, i32, i32
  }
}

</mosaic_0001>

<llo_original>
// kernel: gradcam_forward.1
$region0: #{gradcam_forward.1}
  #allocation0 [shape = 'u32[]', space=smem, size = 0x4, offset = 0x4, fixed_abs, tag = 'smem constant byte address 0x4 - core index']
  #allocation1 [shape = 'u32[144,128]{1,0:T(1,128)}', space=vmem, size = 0x12000, scoped, tag = 'internal scratch']
  %s0 = inlined_call_operand.vmem [shape: f32[2,36,256], index: 0, kind: input, shape index: {}]
  %s1 = inlined_call_operand.vmem [shape: f32[8,36], index: 1, kind: input, shape index: {}]
  %s2 = inlined_call_operand.vmem [shape: f32[8,1], index: 2, kind: input, shape index: {}]
  %s3 = inlined_call_operand.vmem [shape: f32[32,8], index: 3, kind: input, shape index: {}]
  %s4 = inlined_call_operand.vmem [shape: f32[32,1], index: 4, kind: input, shape index: {}]
  %s5 = inlined_call_operand.vmem [shape: f32[5,32], index: 5, kind: input, shape index: {}]
  %s6 = inlined_call_operand.vmem [shape: f32[5,1], index: 6, kind: input, shape index: {}]
  %s7 = inlined_call_operand.vmem [shape: f32[2,8,256], index: 7, kind: output, shape index: {0}]
  %s8 = inlined_call_operand.vmem [shape: f32[2,5,1], index: 8, kind: output, shape index: {1}]
  %9 = xla_tuple %s7, %s8
  %s10 = sld [smem:[#allocation0]]
  $region69: #{gradcam_forward.1} parent=0
    _
  %s12 = ssub.s32 1, %s10
  %s13 = scalar_select 0, %s12, %s10
  loop: start=0, step=1, limit=4
  $region2: #{gradcam_forward.1} parent=0 // loop_pre_header
    _
  $region3: #{gradcam_forward.1} parent=0 // loop_header
    %s15 = sphi 0, %s19
    %p16 = scmp.ge.s32.totalorder %s15, 4
    %s25 = sphi 0, %s27
    %s28 = sphi 0, %s25
    %s29 = sphi 0, %s28
    %s45 = sphi 0, %s29
    %s49 = sphi 0, %s49
    %s51 = sphi 0, %s49
    %s52 = sphi 0, %s51
    %s66 = sphi 0, %s52
    %s70 = sphi 0, %s70
    %s72 = sphi 0, %s70
    %s73 = sphi 0, %s72
    %s87 = sphi 0, %s73
    %s91 = sphi 0, %s91
    %s93 = sphi 0, %s91
    %s94 = sphi 0, %s93
    %s108 = sphi 0, %s94
    %s112 = sphi 0, %s112
    %s114 = sphi 0, %s112
    %s115 = sphi 0, %s114
    %s129 = sphi 0, %s115
    %s133 = sphi 0, %s133
    %s135 = sphi 0, %s133
    %s136 = sphi 0, %s135
    %s150 = sphi 0, %s136
    %s154 = sphi 0, %s154
    %s156 = sphi 0, %s154
    %s157 = sphi 0, %s156
    %s171 = sphi 0, %s157
    %s177 = sphi 0, %s179
    %s180 = sphi 0, %s177
    %s181 = sphi 0, %s180
    %s197 = sphi 0, %s181
    %s203 = sphi 0, %s205
    %s206 = sphi 0, %s203
    %s207 = sphi 0, %s206
    %s223 = sphi 0, %s207
  $region4: #{gradcam_forward.1} parent=0 // loop_header_branch
    %18 = sbr.rel (%p16) target = $region8
  $region5: #{gradcam_forward.1} parent=0 // loop_body
    %s20 = ssub.s32 %s15, 1
    %s21 = ssub.s32 %s15, 2
    %s22 = sadd.s32 %s15, 1
    %s23 = ssub.s32 %s15, %s22
    %p24 = scmp.eq.s32.totalorder %s23, 0
    %s26 = sadd.s32 %s25, 1
    %s27 = scalar_select %p24, %s25, %s26
    %p30 = pneg %p24
    %p31 = scmp.eq.s32.totalorder %s15, 1
    %p32 = por %p30, %p31
    %p33 = scmp.ne.s32.totalorder %s25, %s28
    %p34 = scmp.eq.s32.totalorder %s15, 0
    %p35 = por %p33, %p34
    %p36 = scmp.ne.s32.totalorder %s25, %s28
    %p37 = scmp.eq.s32.totalorder %s20, 1
    %p38 = por %p36, %p37
    %p39 = scmp.ne.s32.totalorder %s28, %s29
    %p40 = scmp.eq.s32.totalorder %s20, 0
    %p41 = por %p39, %p40
    %p42 = scmp.ne.s32.totalorder %s28, %s29
    %p43 = scmp.eq.s32.totalorder %s21, 1
    %p44 = por %p42, %p43
    %p46 = scmp.ne.s32.totalorder %s29, %s45
    %p47 = scmp.eq.s32.totalorder %s21, 0
    %p48 = por %p46, %p47
    %s50 = sadd.s32 %s49, 1
    %p53 = scmp.eq.s32.totalorder %s15, 1
    %p54 = scmp.ne.s32.totalorder %s49, %s51
    %p55 = scmp.eq.s32.totalorder %s15, 0
    %p56 = por %p54, %p55
    %p57 = scmp.ne.s32.totalorder %s49, %s51
    %p58 = scmp.eq.s32.totalorder %s20, 1
    %p59 = por %p57, %p58
    %p60 = scmp.ne.s32.totalorder %s51, %s52
    %p61 = scmp.eq.s32.totalorder %s20, 0
    %p62 = por %p60, %p61
    %p63 = scmp.ne.s32.totalorder %s51, %s52
    %p64 = scmp.eq.s32.totalorder %s21, 1
    %p65 = por %p63, %p64
    %p67 = scmp.ne.s32.totalorder %s52, %s66
    %p68 = scmp.eq.s32.totalorder %s21, 0
    %p69 = por %p67, %p68
    %s71 = sadd.s32 %s70, 1
    %p74 = scmp.eq.s32.totalorder %s15, 1
    %p75 = scmp.ne.s32.totalorder %s70, %s72
    %p76 = scmp.eq.s32.totalorder %s15, 0
    %p77 = por %p75, %p76
    %p78 = scmp.ne.s32.totalorder %s70, %s72
    %p79 = scmp.eq.s32.totalorder %s20, 1
    %p80 = por %p78, %p79
    %p81 = scmp.ne.s32.totalorder %s72, %s73
    %p82 = scmp.eq.s32.totalorder %s20, 0
    %p83 = por %p81, %p82
    %p84 = scmp.ne.s32.totalorder %s72, %s73
    %p85 = scmp.eq.s32.totalorder %s21, 1
    %p86 = por %p84, %p85
    %p88 = scmp.ne.s32.totalorder %s73, %s87
    %p89 = scmp.eq.s32.totalorder %s21, 0
    %p90 = por %p88, %p89
    %s92 = sadd.s32 %s91, 1
    %p95 = scmp.eq.s32.totalorder %s15, 1
    %p96 = scmp.ne.s32.totalorder %s91, %s93
    %p97 = scmp.eq.s32.totalorder %s15, 0
    %p98 = por %p96, %p97
    %p99 = scmp.ne.s32.totalorder %s91, %s93
    %p100 = scmp.eq.s32.totalorder %s20, 1
    %p101 = por %p99, %p100
    %p102 = scmp.ne.s32.totalorder %s93, %s94
    %p103 = scmp.eq.s32.totalorder %s20, 0
    %p104 = por %p102, %p103
    %p105 = scmp.ne.s32.totalorder %s93, %s94
    %p106 = scmp.eq.s32.totalorder %s21, 1
    %p107 = por %p105, %p106
    %p109 = scmp.ne.s32.totalorder %s94, %s108
    %p110 = scmp.eq.s32.totalorder %s21, 0
    %p111 = por %p109, %p110
    %s113 = sadd.s32 %s112, 1
    %p116 = scmp.eq.s32.totalorder %s15, 1
    %p117 = scmp.ne.s32.totalorder %s112, %s114
    %p118 = scmp.eq.s32.totalorder %s15, 0
    %p119 = por %p117, %p118
    %p120 = scmp.ne.s32.totalorder %s112, %s114
    %p121 = scmp.eq.s32.totalorder %s20, 1
    %p122 = por %p120, %p121
    %p123 = scmp.ne.s32.totalorder %s114, %s115
    %p124 = scmp.eq.s32.totalorder %s20, 0
    %p125 = por %p123, %p124
    %p126 = scmp.ne.s32.totalorder %s114, %s115
    %p127 = scmp.eq.s32.totalorder %s21, 1
    %p128 = por %p126, %p127
    %p130 = scmp.ne.s32.totalorder %s115, %s129
    %p131 = scmp.eq.s32.totalorder %s21, 0
    %p132 = por %p130, %p131
    %s134 = sadd.s32 %s133, 1
    %p137 = scmp.eq.s32.totalorder %s15, 1
    %p138 = scmp.ne.s32.totalorder %s133, %s135
    %p139 = scmp.eq.s32.totalorder %s15, 0
    %p140 = por %p138, %p139
    %p141 = scmp.ne.s32.totalorder %s133, %s135
    %p142 = scmp.eq.s32.totalorder %s20, 1
    %p143 = por %p141, %p142
    %p144 = scmp.ne.s32.totalorder %s135, %s136
    %p145 = scmp.eq.s32.totalorder %s20, 0
    %p146 = por %p144, %p145
    %p147 = scmp.ne.s32.totalorder %s135, %s136
    %p148 = scmp.eq.s32.totalorder %s21, 1
    %p149 = por %p147, %p148
    %p151 = scmp.ne.s32.totalorder %s136, %s150
    %p152 = scmp.eq.s32.totalorder %s21, 0
    %p153 = por %p151, %p152
    %s155 = sadd.s32 %s154, 1
    %p158 = scmp.eq.s32.totalorder %s15, 1
    %p159 = scmp.ne.s32.totalorder %s154, %s156
    %p160 = scmp.eq.s32.totalorder %s15, 0
    %p161 = por %p159, %p160
    %p162 = scmp.ne.s32.totalorder %s154, %s156
    %p163 = scmp.eq.s32.totalorder %s20, 1
    %p164 = por %p162, %p163
    %p165 = scmp.ne.s32.totalorder %s156, %s157
    %p166 = scmp.eq.s32.totalorder %s20, 0
    %p167 = por %p165, %p166
    %p168 = scmp.ne.s32.totalorder %s156, %s157
    %p169 = scmp.eq.s32.totalorder %s21, 1
    %p170 = por %p168, %p169
    %p172 = scmp.ne.s32.totalorder %s157, %s171
    %p173 = scmp.eq.s32.totalorder %s21, 0
    %p174 = por %p172, %p173
    %s175 = ssub.s32 %s15, %s22
    %p176 = scmp.eq.s32.totalorder %s175, 0
    %s178 = sadd.s32 %s177, 1
    %s179 = scalar_select %p176, %s177, %s178
    %p182 = pneg %p176
    %p183 = scmp.eq.s32.totalorder %s15, 1
    %p184 = por %p182, %p183
    %p185 = scmp.ne.s32.totalorder %s177, %s180
    %p186 = scmp.eq.s32.totalorder %s15, 0
    %p187 = por %p185, %p186
    %p188 = scmp.ne.s32.totalorder %s177, %s180
    %p189 = scmp.eq.s32.totalorder %s20, 1
    %p190 = por %p188, %p189
    %p191 = scmp.ne.s32.totalorder %s180, %s181
    %p192 = scmp.eq.s32.totalorder %s20, 0
    %p193 = por %p191, %p192
    %p194 = scmp.ne.s32.totalorder %s180, %s181
    %p195 = scmp.eq.s32.totalorder %s21, 1
    %p196 = por %p194, %p195
    %p198 = scmp.ne.s32.totalorder %s181, %s197
    %p199 = scmp.eq.s32.totalorder %s21, 0
    %p200 = por %p198, %p199
    %s201 = ssub.s32 %s15, %s22
    %p202 = scmp.eq.s32.totalorder %s201, 0
    %s204 = sadd.s32 %s203, 1
    %s205 = scalar_select %p202, %s203, %s204
    %p208 = pneg %p202
    %p209 = scmp.eq.s32.totalorder %s15, 1
    %p210 = por %p208, %p209
    %p211 = scmp.ne.s32.totalorder %s203, %s206
    %p212 = scmp.eq.s32.totalorder %s15, 0
    %p213 = por %p211, %p212
    %p214 = scmp.ne.s32.totalorder %s203, %s206
    %p215 = scmp.eq.s32.totalorder %s20, 1
    %p216 = por %p214, %p215
    %p217 = scmp.ne.s32.totalorder %s206, %s207
    %p218 = scmp.eq.s32.totalorder %s20, 0
    %p219 = por %p217, %p218
    %p220 = scmp.ne.s32.totalorder %s206, %s207
    %p221 = scmp.eq.s32.totalorder %s21, 1
    %p222 = por %p220, %p221
    %p224 = scmp.ne.s32.totalorder %s207, %s223
    %p225 = scmp.eq.s32.totalorder %s21, 0
    %p226 = por %p224, %p225
    %p227 = scmp.le.s32.totalorder 1, %s15
    %p228 = scmp.lt.s32.totalorder %s15, 3
    %p229 = pnand %p227, %p228
    %p230 = pneg %p229
    // Predicated region
    $region9: #{gradcam_forward.1} parent=5 // pred_check
      _
    $region10: #{gradcam_forward.1} parent=5 // pred_check_branch
      %232 = sbr.rel (%p229) target = $region12
    $region11: #{gradcam_forward.1} parent=5 // pred_region
      %s233 = ssub.s32 %s15, 1
      // Predicated region
      $region13: #{gradcam_forward.1} parent=11 // pred_check
        %p234 = pneg %p62
      $region14: #{gradcam_forward.1} parent=11 // pred_check_branch
        %236 = sbr.rel (%p234) target = $region16
      $region15: #{gradcam_forward.1} parent=11 // pred_region
        _
      $region16: #{gradcam_forward.1} parent=11 // pred_fallthru
        _
      // Predicated region
      $region17: #{gradcam_forward.1} parent=11 // pred_check
        %p237 = pneg %p83
      $region18: #{gradcam_forward.1} parent=11 // pred_check_branch
        %239 = sbr.rel (%p237) target = $region20
      $region19: #{gradcam_forward.1} parent=11 // pred_region
        _
      $region20: #{gradcam_forward.1} parent=11 // pred_fallthru
        _
      // Predicated region
      $region21: #{gradcam_forward.1} parent=11 // pred_check
        %p240 = pneg %p104
      $region22: #{gradcam_forward.1} parent=11 // pred_check_branch
        %242 = sbr.rel (%p240) target = $region24
      $region23: #{gradcam_forward.1} parent=11 // pred_region
        _
      $region24: #{gradcam_forward.1} parent=11 // pred_fallthru
        _
      // Predicated region
      $region25: #{gradcam_forward.1} parent=11 // pred_check
        %p243 = pneg %p125
      $region26: #{gradcam_forward.1} parent=11 // pred_check_branch
        %245 = sbr.rel (%p243) target = $region28
      $region27: #{gradcam_forward.1} parent=11 // pred_region
        _
      $region28: #{gradcam_forward.1} parent=11 // pred_fallthru
        _
      // Predicated region
      $region29: #{gradcam_forward.1} parent=11 // pred_check
        %p246 = pneg %p146
      $region30: #{gradcam_forward.1} parent=11 // pred_check_branch
        %248 = sbr.rel (%p246) target = $region32
      $region31: #{gradcam_forward.1} parent=11 // pred_region
        _
      $region32: #{gradcam_forward.1} parent=11 // pred_fallthru
        _
      // Predicated region
      $region33: #{gradcam_forward.1} parent=11 // pred_check
        %p249 = pneg %p167
      $region34: #{gradcam_forward.1} parent=11 // pred_check_branch
        %251 = sbr.rel (%p249) target = $region36
      $region35: #{gradcam_forward.1} parent=11 // pred_region
        _
      $region36: #{gradcam_forward.1} parent=11 // pred_fallthru
        _
    $region12: #{gradcam_forward.1} parent=5 // pred_fallthru
      _
    %p252 = scmp.lt.s32.totalorder %s15, 2
    // Predicated region
    $region37: #{gradcam_forward.1} parent=5 // pred_check
      %p253 = pneg %p252
    $region38: #{gradcam_forward.1} parent=5 // pred_check_branch
      %255 = sbr.rel (%p253) target = $region40
    $region39: #{gradcam_forward.1} parent=5 // pred_region
      // Predicated region
      $region41: #{gradcam_forward.1} parent=39 // pred_check
        %p256 = pneg %p35
      $region42: #{gradcam_forward.1} parent=39 // pred_check_branch
        %258 = sbr.rel (%p256) target = $region44
      $region43: #{gradcam_forward.1} parent=39 // pred_region
        %p259 = scmp.lt.s32.totalorder %s15, 1
        %s260 = scalar_select %p259, %s15, 1
        %s261 = smul.addr %s260, 10
        %s262 = smul.addr %s261, 8
        %s263 = scalar_lea.vmem %s0, %s262
      $region44: #{gradcam_forward.1} parent=39 // pred_fallthru
        _
    $region40: #{gradcam_forward.1} parent=5 // pred_fallthru
      _
    %p264 = scmp.le.s32.totalorder 1, %s15
    %p265 = scmp.lt.s32.totalorder %s15, 3
    %p266 = pnand %p264, %p265
    %p267 = pneg %p266
    // Predicated region
    $region45: #{gradcam_forward.1} parent=5 // pred_check
      _
    $region46: #{gradcam_forward.1} parent=5 // pred_check_branch
      %269 = sbr.rel (%p266) target = $region48
    $region47: #{gradcam_forward.1} parent=5 // pred_region
      %s270 = ssub.s32 %s15, 1
      %p271 = scmp.lt.s32.totalorder %s20, 1
      %s272 = scalar_select %p271, %s20, 1
      %s273 = smul.addr %s272, 10
      %s274 = smul.addr %s273, 8
      %s275 = scalar_lea.vmem %s0, %s274
      %p276 = pneg %p41
      %p277 = pneg %p38
      %p278 = pneg %p62
      %p279 = pneg %p59
      %p280 = pneg %p83
      %p281 = pneg %p80
      %p282 = pneg %p104
      %p283 = pneg %p101
      %p284 = pneg %p125
      %p285 = pneg %p122
      %p286 = pneg %p146
      %p287 = pneg %p143
      %p288 = pneg %p167
      %p289 = pneg %p164
      %p290 = pneg %p193
      %p291 = pneg %p190
      %p292 = scmp.lt.s32.totalorder %s20, 1
      %s293 = scalar_select %p292, %s20, 1
      %s294 = smul.addr %s293, 2
      %s295 = smul.addr %s294, 8
      %s296 = scalar_lea.vmem %s7, %s295
      %p297 = pneg %p219
      %p298 = pneg %p216
      %p299 = scmp.lt.s32.totalorder %s20, 1
      %s300 = scalar_select %p299, %s20, 1
      %s301 = smul.addr %s300, 8
      %s302 = scalar_lea.vmem %s8, %s301
      %p303 = scmp.lt.s32.totalorder %s20, 1
      %s304 = scalar_select %p303, %s20, 1
      %s305 = smul.addr %s304, 10
      %s306 = smul.addr %s305, 8
      %s307 = scalar_lea.vmem %s0, %s306
      %p308 = scmp.lt.s32.totalorder %s20, 1
      %s309 = scalar_select %p308, %s20, 1
      %s310 = smul.addr %s309, 2
      %s311 = smul.addr %s310, 8
      %s312 = scalar_lea.vmem %s7, %s311
      %p313 = scmp.lt.s32.totalorder %s20, 1
      %s314 = scalar_select %p313, %s20, 1
      %s315 = smul.addr %s314, 8
      %s316 = scalar_lea.vmem %s8, %s315
      %v317 = vld [vmem:[%s1] sm:$0xff]
      %v318 = vld [vmem:[%s307] sm:$0xff]
      %v319 = vld [vmem:[%s307 + $0x8] sm:$0xff]
      %v320 = vld [vmem:[%s307 + $0x10] sm:$0xff]
      %v321 = vld [vmem:[%s307 + $0x18] sm:$0xff]
      %v322 = vld [vmem:[%s307 + $0x20] sm:$0xff]
      %v323 = vld [vmem:[%s307 + $0x28] sm:$0xff]
      %v324 = vld [vmem:[%s307 + $0x30] sm:$0xff]
      %v325 = vld [vmem:[%s307 + $0x38] sm:$0xff]
      %v326 = vld [vmem:[%s307 + $0x40] sm:$0xf]
      %v327 = vld [vmem:[%s307 + $0x48] sm:$0xf]
      %v328 = vld [vmem:[%s2] sm:$0xff]
      %330 = vset.pattern.permute.xlu0 0
      %331 = vperm.xlu0 %330, %v328
      %v332 = vpop.permute.xlu0 %331
      %vm334 = vcmask 293888
      %v336 = vsel %vm334, %v317, 0
      %vm338 = vcmask 1043456
      %v340 = vsel %vm338, %v326, 0
      %v343 = vsel %vm338, %v327, 0
      %345 = vmatprep.subr.mxu0 %v319
      %346 = vmatpush1.msra.mxu0 %v318
      %347 = vmatprep.subr.mxu0 %v321
      %348 = vmatpush1.msra.mxu0 %v320
      %349 = vmatprep.subr.mxu0 %v323
      %350 = vmatpush1.msra.mxu0 %v322
      %351 = vmatprep.subr.mxu0 %v325
      %352 = vmatpush1.msra.mxu0 %v324
      %353 = vmatprep.subr.mxu0 %v343
      %354 = vmatpush1.msra.mxu0 %v340
      %355 = vmatprep.subr.mxu0 0.0
      %356 = vmatpush1.msra.mxu0 0.0
      %357 = vmatprep.subr.mxu0 0.0
      %358 = vmatpush1.msra.mxu0 0.0
      %359 = vmatprep.subr.mxu0 0.0
      %360 = vmatpush1.msra.mxu0 0.0
      %361 = vmatprep.subr.mxu0 0.0
      %362 = vmatpush1.msra.mxu0 0.0
      %363 = vmatprep.subr.mxu0 0.0
      %364 = vmatpush1.msra.mxu0 0.0
      %365 = vmatprep.subr.mxu0 0.0
      %366 = vmatpush1.msra.mxu0 0.0
      %367 = vmatprep.subr.mxu0 0.0
      %368 = vmatpush1.msra.mxu0 0.0
      %369 = vmatprep.subr.mxu0 0.0
      %370 = vmatpush1.msra.mxu0 0.0
      %371 = vmatprep.subr.mxu0 0.0
      %372 = vmatpush1.msra.mxu0 0.0
      %373 = vmatprep.subr.mxu0 0.0
      %374 = vmatpush1.msra.mxu0 0.0
      %375 = vmatprep.subr.mxu0 0.0
      %376 = vmatpush1.msra.mxu0 0.0
      %377 = vmatprep.subr.mxu0 0.0
      %378 = vmatpush1.msra.mxu0 0.0
      %379 = vmatprep.subr.mxu0 0.0
      %380 = vmatpush1.msra.mxu0 0.0
      %381 = vmatprep.subr.mxu0 0.0
      %382 = vmatpush1.msra.mxu0 0.0
      %383 = vmatprep.subr.mxu0 0.0
      %384 = vmatpush1.msra.mxu0 0.0
      %385 = vmatprep.subr.mxu0 0.0
      %386 = vmatpush1.msra.mxu0 0.0
      %387 = vmatprep.subr.mxu0 0.0
      %388 = vmatpush1.msra.mxu0 0.0
      %389 = vmatprep.subr.mxu0 0.0
      %390 = vmatpush1.msra.mxu0 0.0
      %391 = vmatprep.subr.mxu0 0.0
      %392 = vmatpush1.msra.mxu0 0.0
      %393 = vmatprep.subr.mxu0 0.0
      %394 = vmatpush1.msra.mxu0 0.0
      %395 = vmatprep.subr.mxu0 0.0
      %396 = vmatpush1.msra.mxu0 0.0
      %397 = vmatprep.subr.mxu0 0.0
      %398 = vmatpush1.msra.mxu0 0.0
      %399 = vmatprep.subr.mxu0 0.0
      %400 = vmatpush1.msra.mxu0 0.0
      %401 = vmatprep.subr.mxu0 0.0
      %402 = vmatpush1.msra.mxu0 0.0
      %403 = vmatprep.subr.mxu0 0.0
      %404 = vmatpush1.msra.mxu0 0.0
      %405 = vmatprep.subr.mxu0 0.0
      %406 = vmatpush1.msra.mxu0 0.0
      %407 = vmatprep.subr.mxu0 0.0
      %408 = vmatpush1.msra.mxu0 0.0
      %409 = vmatprep.mubr.f32.mxu0 0.0
      %410 = vmatmul.mubr.f32.gmra.mrb[0].mxu0 %v336
      %v411 = vpop.f32.mrb[0].mxu0
      %v412 = vadd.f32 %v332, %v411
      %v413 = vpop.f32.mrb[0].mxu0
      %v414 = vadd.f32 %v332, %v413
      %415 = vdwg.mxu0
      %v416 = vmax.f32 %v412, 0.0
      %v417 = vmax.f32 %v414, 0.0
      %418 = vst [vmem:[%s312] sm:$0xff] %v416
      %419 = vst [vmem:[%s312 + $0x8] sm:$0xff] %v417
      %v420 = vadd.f32 %v416, %v417
      %421 = vadd.xlane.f32.xlu0 %v420
      %v422 = vpop.xlane.xlu0 %421
      %v423 = vrcp.pop 256.0
      %v424 = vmul.f32 %v422, %v423
      %v425 = vld [vmem:[%s3] sm:$0xff]
      %v426 = vld [vmem:[%s3 + $0x8] sm:$0xff]
      %v427 = vld [vmem:[%s3 + $0x10] sm:$0xff]
      %v428 = vld [vmem:[%s3 + $0x18] sm:$0xff]
      %v429 = vld [vmem:[%s4] sm:$0xff]
      %v430 = vld [vmem:[%s4 + $0x8] sm:$0xff]
      %v431 = vld [vmem:[%s4 + $0x10] sm:$0xff]
      %v432 = vld [vmem:[%s4 + $0x18] sm:$0xff]
      %vm433 = vcmask 64512
      %v435 = vsel %vm433, %v425, 0
      %v438 = vsel %vm433, %v426, 0
      %v441 = vsel %vm433, %v427, 0
      %v444 = vsel %vm433, %v428, 0
      %446 = vmatprep.subr.mxu0 0.0
      %447 = vmatpush1.msra.mxu0 %v424
      %448 = vmatprep.subr.mxu0 0.0
      %449 = vmatpush1.msra.mxu0 0.0
      %450 = vmatprep.subr.mxu0 0.0
      %451 = vmatpush1.msra.mxu0 0.0
      %452 = vmatprep.subr.mxu0 0.0
      %453 = vmatpush1.msra.mxu0 0.0
      %454 = vmatprep.subr.mxu0 0.0
      %455 = vmatpush1.msra.mxu0 0.0
      %456 = vmatprep.subr.mxu0 0.0
      %457 = vmatpush1.msra.mxu0 0.0
      %458 = vmatprep.subr.mxu0 0.0
      %459 = vmatpush1.msra.mxu0 0.0
      %460 = vmatprep.subr.mxu0 0.0
      %461 = vmatpush1.msra.mxu0 0.0
      %462 = vmatprep.subr.mxu0 0.0
      %463 = vmatpush1.msra.mxu0 0.0
      %464 = vmatprep.subr.mxu0 0.0
      %465 = vmatpush1.msra.mxu0 0.0
      %466 = vmatprep.subr.mxu0 0.0
      %467 = vmatpush1.msra.mxu0 0.0
      %468 = vmatprep.subr.mxu0 0.0
      %469 = vmatpush1.msra.mxu0 0.0
      %470 = vmatprep.subr.mxu0 0.0
      %471 = vmatpush1.msra.mxu0 0.0
      %472 = vmatprep.subr.mxu0 0.0
      %473 = vmatpush1.msra.mxu0 0.0
      %474 = vmatprep.subr.mxu0 0.0
      %475 = vmatpush1.msra.mxu0 0.0
      %476 = vmatprep.subr.mxu0 0.0
      %477 = vmatpush1.msra.mxu0 0.0
      %478 = vmatprep.subr.mxu0 0.0
      %479 = vmatpush1.msra.mxu0 0.0
      %480 = vmatprep.subr.mxu0 0.0
      %481 = vmatpush1.msra.mxu0 0.0
      %482 = vmatprep.subr.mxu0 0.0
      %483 = vmatpush1.msra.mxu0 0.0
      %484 = vmatprep.subr.mxu0 0.0
      %485 = vmatpush1.msra.mxu0 0.0
      %486 = vmatprep.subr.mxu0 0.0
      %487 = vmatpush1.msra.mxu0 0.0
      %488 = vmatprep.subr.mxu0 0.0
      %489 = vmatpush1.msra.mxu0 0.0
      %490 = vmatprep.subr.mxu0 0.0
      %491 = vmatpush1.msra.mxu0 0.0
      %492 = vmatprep.subr.mxu0 0.0
      %493 = vmatpush1.msra.mxu0 0.0
      %494 = vmatprep.subr.mxu0 0.0
      %495 = vmatpush1.msra.mxu0 0.0
      %496 = vmatprep.subr.mxu0 0.0
      %497 = vmatpush1.msra.mxu0 0.0
      %498 = vmatprep.subr.mxu0 0.0
      %499 = vmatpush1.msra.mxu0 0.0
      %500 = vmatprep.subr.mxu0 0.0
      %501 = vmatpush1.msra.mxu0 0.0
      %502 = vmatprep.subr.mxu0 0.0
      %503 = vmatpush1.msra.mxu0 0.0
      %504 = vmatprep.subr.mxu0 0.0
      %505 = vmatpush1.msra.mxu0 0.0
      %506 = vmatprep.subr.mxu0 0.0
      %507 = vmatpush1.msra.mxu0 0.0
      %508 = vmatprep.subr.mxu0 0.0
      %509 = vmatpush1.msra.mxu0 0.0
      %510 = vmatprep.mubr.f32.mxu0 0.0
      %511 = vmatmul.mubr.f32.gmra.mrb[0].mxu0 %v435
      %v512 = vpop.f32.mrb[0].mxu0
      %v513 = vadd.f32 %v429, %v512
      %v514 = vpop.f32.mrb[0].mxu0
      %515 = vmatprep.mubr.f32.mxu0 0.0
      %516 = vmatmul.mubr.f32.gmra.mrb[0].mxu0 %v438
      %v517 = vpop.f32.mrb[0].mxu0
      %v518 = vadd.f32 %v430, %v517
      %v519 = vpop.f32.mrb[0].mxu0
      %520 = vmatprep.mubr.f32.mxu0 0.0
      %521 = vmatmul.mubr.f32.gmra.mrb[0].mxu0 %v441
      %v522 = vpop.f32.mrb[0].mxu0
      %v523 = vadd.f32 %v431, %v522
      %v524 = vpop.f32.mrb[0].mxu0
      %525 = vmatprep.mubr.f32.mxu0 0.0
      %526 = vmatmul.mubr.f32.gmra.mrb[0].mxu0 %v444
      %v527 = vpop.f32.mrb[0].mxu0
      %v528 = vadd.f32 %v432, %v527
      %v529 = vpop.f32.mrb[0].mxu0
      %530 = vdwg.mxu0
      %v531 = vmax.f32 %v513, 0.0
      %v532 = vmax.f32 %v518, 0.0
      %v533 = vmax.f32 %v523, 0.0
      %v534 = vmax.f32 %v528, 0.0
      %v535 = vld [vmem:[%s5] sm:$0x1f]
      %v536 = vld [vmem:[%s6] sm:$0x1f]
      %vm537 = vcmask 261120
      %v539 = vsel %vm537, %v535, 0
      %541 = vmatprep.subr.mxu0 0.0
      %542 = vmatpush1.msra.mxu0 %v531
      %543 = vmatprep.subr.mxu0 0.0
      %544 = vmatpush1.msra.mxu0 %v532
      %545 = vmatprep.subr.mxu0 0.0
      %546 = vmatpush1.msra.mxu0 %v533
      %547 = vmatprep.subr.mxu0 0.0
      %548 = vmatpush1.msra.mxu0 %v534
      %549 = vmatprep.subr.mxu0 0.0
      %550 = vmatpush1.msra.mxu0 0.0
      %551 = vmatprep.subr.mxu0 0.0
      %552 = vmatpush1.msra.mxu0 0.0
      %553 = vmatprep.subr.mxu0 0.0
      %554 = vmatpush1.msra.mxu0 0.0
      %555 = vmatprep.subr.mxu0 0.0
      %556 = vmatpush1.msra.mxu0 0.0
      %557 = vmatprep.subr.mxu0 0.0
      %558 = vmatpush1.msra.mxu0 0.0
      %559 = vmatprep.subr.mxu0 0.0
      %560 = vmatpush1.msra.mxu0 0.0
      %561 = vmatprep.subr.mxu0 0.0
      %562 = vmatpush1.msra.mxu0 0.0
      %563 = vmatprep.subr.mxu0 0.0
      %564 = vmatpush1.msra.mxu0 0.0
      %565 = vmatprep.subr.mxu0 0.0
      %566 = vmatpush1.msra.mxu0 0.0
      %567 = vmatprep.subr.mxu0 0.0
      %568 = vmatpush1.msra.mxu0 0.0
      %569 = vmatprep.subr.mxu0 0.0
      %570 = vmatpush1.msra.mxu0 0.0
      %571 = vmatprep.subr.mxu0 0.0
      %572 = vmatpush1.msra.mxu0 0.0
      %573 = vmatprep.subr.mxu0 0.0
      %574 = vmatpush1.msra.mxu0 0.0
      %575 = vmatprep.subr.mxu0 0.0
      %576 = vmatpush1.msra.mxu0 0.0
      %577 = vmatprep.subr.mxu0 0.0
      %578 = vmatpush1.msra.mxu0 0.0
      %579 = vmatprep.subr.mxu0 0.0
      %580 = vmatpush1.msra.mxu0 0.0
      %581 = vmatprep.subr.mxu0 0.0
      %582 = vmatpush1.msra.mxu0 0.0
      %583 = vmatprep.subr.mxu0 0.0
      %584 = vmatpush1.msra.mxu0 0.0
      %585 = vmatprep.subr.mxu0 0.0
      %586 = vmatpush1.msra.mxu0 0.0
      %587 = vmatprep.subr.mxu0 0.0
      %588 = vmatpush1.msra.mxu0 0.0
      %589 = vmatprep.subr.mxu0 0.0
      %590 = vmatpush1.msra.mxu0 0.0
      %591 = vmatprep.subr.mxu0 0.0
      %592 = vmatpush1.msra.mxu0 0.0
      %593 = vmatprep.subr.mxu0 0.0
      %594 = vmatpush1.msra.mxu0 0.0
      %595 = vmatprep.subr.mxu0 0.0
      %596 = vmatpush1.msra.mxu0 0.0
      %597 = vmatprep.subr.mxu0 0.0
      %598 = vmatpush1.msra.mxu0 0.0
      %599 = vmatprep.subr.mxu0 0.0
      %600 = vmatpush1.msra.mxu0 0.0
      %601 = vmatprep.subr.mxu0 0.0
      %602 = vmatpush1.msra.mxu0 0.0
      %603 = vmatprep.subr.mxu0 0.0
      %604 = vmatpush1.msra.mxu0 0.0
      %605 = vmatprep.mubr.f32.mxu0 0.0
      %606 = vmatmul.mubr.f32.gmra.mrb[0].mxu0 %v539
      %v607 = vpop.f32.mrb[0].mxu0
      %v608 = vadd.f32 %v536, %v607
      %v609 = vpop.f32.mrb[0].mxu0
      %610 = vdwg.mxu0
      %vm611 = vcmask 4096
      %612 = vst.msk [vmem:[%s316] sm:$0x1f] %vm611, %v608
      %p613 = scmp.lt.s32.totalorder %s20, 1
      %s614 = scalar_select %p613, %s20, 1
      %s615 = smul.addr %s614, 2
      %s616 = smul.addr %s615, 8
      %s617 = scalar_lea.vmem %s7, %s616
      %p618 = scmp.lt.s32.totalorder %s20, 1
      %s619 = scalar_select %p618, %s20, 1
      %s620 = smul.addr %s619, 8
      %s621 = scalar_lea.vmem %s8, %s620
      // Predicated region
      $region49: #{gradcam_forward.1} parent=47 // pred_check
        %p622 = pneg %p190
      $region50: #{gradcam_forward.1} parent=47 // pred_check_branch
        %624 = sbr.rel (%p622) target = $region52
      $region51: #{gradcam_forward.1} parent=47 // pred_region
        _
      $region52: #{gradcam_forward.1} parent=47 // pred_fallthru
        _
      // Predicated region
      $region53: #{gradcam_forward.1} parent=47 // pred_check
        %p625 = pneg %p216
      $region54: #{gradcam_forward.1} parent=47 // pred_check_branch
        %627 = sbr.rel (%p625) target = $region56
      $region55: #{gradcam_forward.1} parent=47 // pred_region
        _
      $region56: #{gradcam_forward.1} parent=47 // pred_fallthru
        _
    $region48: #{gradcam_forward.1} parent=5 // pred_fallthru
      _
    %p628 = scmp.le.s32.totalorder 2, %s15
    // Predicated region
    $region57: #{gradcam_forward.1} parent=5 // pred_check
      %p629 = pneg %p628
    $region58: #{gradcam_forward.1} parent=5 // pred_check_branch
      %631 = sbr.rel (%p629) target = $region60
    $region59: #{gradcam_forward.1} parent=5 // pred_region
      %s632 = ssub.s32 %s15, 2
      // Predicated region
      $region61: #{gradcam_forward.1} parent=59 // pred_check
        %p633 = pneg %p196
      $region62: #{gradcam_forward.1} parent=59 // pred_check_branch
        %635 = sbr.rel (%p633) target = $region64
      $region63: #{gradcam_forward.1} parent=59 // pred_region
        %p636 = scmp.lt.s32.totalorder %s21, 1
        %s637 = scalar_select %p636, %s21, 1
        %s638 = smul.addr %s637, 2
        %s639 = smul.addr %s638, 8
        %s640 = scalar_lea.vmem %s7, %s639
      $region64: #{gradcam_forward.1} parent=59 // pred_fallthru
        _
      // Predicated region
      $region65: #{gradcam_forward.1} parent=59 // pred_check
        %p641 = pneg %p222
      $region66: #{gradcam_forward.1} parent=59 // pred_check_branch
        %643 = sbr.rel (%p641) target = $region68
      $region67: #{gradcam_forward.1} parent=59 // pred_region
        %p644 = scmp.lt.s32.totalorder %s21, 1
        %s645 = scalar_select %p644, %s21, 1
        %s646 = smul.addr %s645, 8
        %s647 = scalar_lea.vmem %s8, %s646
      $region68: #{gradcam_forward.1} parent=59 // pred_fallthru
        _
    $region60: #{gradcam_forward.1} parent=5 // pred_fallthru
      _
  $region6: #{gradcam_forward.1} parent=0 // loop_footer
    %s19 = sadd.s32 1, %s15
  $region7: #{gradcam_forward.1} parent=0 // loop_footer_branch
    %14 = sbr.rel target = $region3
  $region8: #{gradcam_forward.1} parent=0 // loop_exit
    _

</llo_original>
